<compile_context>
chip_gen: v7x
topology: tpu7x:2x2x1
jax: 0.10.0
libtpu: 0.0.40
codegen_flags: <defaults>
</compile_context>

<pallas_src>
import functools

import jax
import jax.numpy as jnp
from jax.experimental import pallas as pl
from jax.experimental.pallas import tpu as pltpu

_LANE = 128


def _round_up(x, m):
    return -(-x // m) * m


def _excl_kernel(g1_ref, g2_ref, out_ref, *, tile_s, level_starts):
    """One (direction, tile) grid step of the fused exclusion-loss reduction.

    g1_ref / g2_ref : (1, 3, tile_s, 128) f32 raw finite-difference gradients
        of img1 / img2 — channels on a small outer dim, full (8,128) vreg
        tiles underneath (full sublane/lane occupancy for EUP/VPU work).
    out_ref : (1, 9, 8, 128) f32 partial-sum block for the (direction, level)
        this tile belongs to; row k = 3*i + j accumulates
        sum over the level of tanh(g1[j]/2)^2 * tanh(g2[i]/2)^2.
    level_starts : static tuple of the first tile index of every level.
    """
    t = pl.program_id(1)

    is_level_start = (t == level_starts[0])
    for s in level_starts[1:]:
        is_level_start = jnp.logical_or(is_level_start, t == s)

    @pl.when(is_level_start)
    def _():
        out_ref[...] = jnp.zeros_like(out_ref)

    # (2*sigmoid(x) - 1)^2 == tanh(x/2)^2  ->  one EUP op + VPU muls, full vregs.
    s1 = jnp.tanh(0.5 * g1_ref[0])
    s1 = s1 * s1                                   # (3, tile_s, 128)
    s2 = jnp.tanh(0.5 * g2_ref[0])
    s2 = s2 * s2

    r = tile_s // 8
    for i in range(3):
        for j in range(3):
            prod = s1[j] * s2[i]                   # (tile_s, 128), VPU
            if r > 1:
                part = prod.reshape(r, 8, _LANE).sum(axis=0)   # (8,128) VPU adds
            else:
                part = prod
            out_ref[0, 3 * i + j] += part


def _make_out_index_map(level_starts):
    bounds = tuple(level_starts[1:])

    def index_map(d, t):
        lvl = 0
        for bnd in bounds:
            lvl = lvl + (t >= bnd).astype(jnp.int32)
        return (d, lvl, 0, 0)

    return index_map


def _avg_pool_2x2_cmajor(x):
    # AvgPool2d(kernel=2, stride=2), floor mode, on channel-major (C, B, H, W).
    c, b, h, w = x.shape
    x = x[:, :, : (h // 2) * 2, : (w // 2) * 2]
    return x.reshape(c, b, h // 2, 2, w // 2, 2).mean(axis=(3, 5))


@functools.partial(jax.jit, static_argnames=("level",))
def exclusion_loss(img1, img2, level=3):
    if img1.shape != img2.shape or img1.shape[1] != 3:
        raise ValueError("ExclusionLoss expects matching NCHW inputs with 3 channels")
    bsz = img1.shape[0]

    # Channel-major once, up front; nothing downstream transposes again.
    a = jnp.transpose(img1, (1, 0, 2, 3)).astype(jnp.float32)
    b = jnp.transpose(img2, (1, 0, 2, 3)).astype(jnp.float32)

    segs = {"x1": [], "y1": [], "x2": [], "y2": []}
    counts_x, counts_y = [], []
    for l in range(level):
        h, w = a.shape[2], a.shape[3]
        if h < 2 or w < 2:
            raise ValueError(f"level {l}: spatial dims {h}x{w} too small for gradients")
        # compute_gradient: diff along H (gradx) and W (grady), per channel.
        segs["x1"].append((a[:, :, 1:, :] - a[:, :, :-1, :]).reshape(3, -1))
        segs["y1"].append((a[:, :, :, 1:] - a[:, :, :, :-1]).reshape(3, -1))
        segs["x2"].append((b[:, :, 1:, :] - b[:, :, :-1, :]).reshape(3, -1))
        segs["y2"].append((b[:, :, :, 1:] - b[:, :, :, :-1]).reshape(3, -1))
        counts_x.append(bsz * (h - 1) * w)
        counts_y.append(bsz * h * (w - 1))
        if l + 1 < level:
            a = _avg_pool_2x2_cmajor(a)
            b = _avg_pool_2x2_cmajor(b)

    # Tile sizing: full (8,128) tiles; large enough to amortize per-step
    # overhead, small enough that 2 inputs x double buffering stays well inside
    # v7x's 64 MiB VMEM (3*512*128*4 B ~= 0.75 MiB per input block).
    max_sub = max(-(-c // _LANE) for c in counts_x + counts_y)
    tile_s = min(512, _round_up(max_sub, 8))
    tile_elems = tile_s * _LANE

    tiles_per_level = [
        max(-(-cx // tile_elems), -(-cy // tile_elems))
        for cx, cy in zip(counts_x, counts_y)
    ]
    num_tiles = sum(tiles_per_level)
    level_starts = [0]
    for n in tiles_per_level[:-1]:
        level_starts.append(level_starts[-1] + n)

    def pack(seg_list):
        # Levels concatenated along the sublane axis, each zero-padded to a
        # whole number of (tile_s, 128) tiles (padding contributes exactly 0;
        # means divide by the true element count afterwards).
        parts = []
        for l, flat in enumerate(seg_list):
            padded = tiles_per_level[l] * tile_elems
            cnt = flat.shape[1]
            if padded != cnt:
                flat = jnp.pad(flat, ((0, 0), (0, padded - cnt)))
            parts.append(flat.reshape(3, tiles_per_level[l] * tile_s, _LANE))
        return jnp.concatenate(parts, axis=1) if len(parts) > 1 else parts[0]

    g1 = jnp.stack([pack(segs["x1"]), pack(segs["y1"])], axis=0)  # (2, 3, S, 128)
    g2 = jnp.stack([pack(segs["x2"]), pack(segs["y2"])], axis=0)  # (2, 3, S, 128)

    kernel = functools.partial(_excl_kernel, tile_s=tile_s,
                               level_starts=tuple(level_starts))

    out_size = 2 * level * 9 * 8 * _LANE
    cost = pl.CostEstimate(
        flops=int(10 * g1.size),            # 0.5*x, square, 9x(mul+add)/pos
        transcendentals=int(2 * g1.size),   # tanh on both images
        bytes_accessed=int(4 * (g1.size + g2.size + out_size)),
    )

    partial_sums = pl.pallas_call(
        kernel,
        out_shape=jax.ShapeDtypeStruct((2, level * 9, 8, _LANE), jnp.float32),
        grid=(2, num_tiles),
        in_specs=[pl.BlockSpec((1, 3, tile_s, _LANE), lambda d, t: (d, 0, t, 0)),
                  pl.BlockSpec((1, 3, tile_s, _LANE), lambda d, t: (d, 0, t, 0))],
        out_specs=pl.BlockSpec((1, 9, 8, _LANE), _make_out_index_map(level_starts)),
        compiler_params=pltpu.CompilerParams(
            dimension_semantics=("parallel", "arbitrary")),
        cost_estimate=cost,
    )(g1, g2)

    # Cross-lane reduction of the tiny partial-sum array + normalization stay
    # in the wrapper (27*8*128 floats — negligible).
    sums = partial_sums.reshape(2, level, 9, 8 * _LANE).sum(axis=-1)  # (2, L, 9)
    counts = jnp.array([counts_x, counts_y], dtype=jnp.float32)       # (2, L)
    means = sums / counts[:, :, None]

    # loss = (sum_x m**0.25)/(L*9) + (sum_y m**0.25)/(L*9), then /2.
    # NOTE: **0.25 has an infinite gradient at exactly 0 (same as the PyTorch module).
    loss = jnp.sum(means ** 0.25) / (level * 9)
    return loss / 2.0


# ---------------------------------------------------------------------------
# Pure-JAX reference (mirrors the PyTorch module) for a correctness check.
# ---------------------------------------------------------------------------
def _reference_exclusion_loss(img1, img2, level=3):
    def pool(x):
        b_, c_, h_, w_ = x.shape
        x = x[:, :, : (h_ // 2) * 2, : (w_ // 2) * 2]
        return x.reshape(b_, c_, h_ // 2, 2, w_ // 2, 2).mean(axis=(3, 5))

    def grads(img):
        gx = img[:, :, 1:, :] - img[:, :, :-1, :]
        gy = img[:, :, :, 1:] - img[:, :, :, :-1]
        return gx, gy

    gx_terms, gy_terms = [], []
    for _ in range(level):
        gx1, gy1 = grads(img1)
        gx2, gy2 = grads(img2)
        gx1s = jax.nn.sigmoid(gx1) * 2 - 1
        gy1s = jax.nn.sigmoid(gy1) * 2 - 1
        gx2s = jax.nn.sigmoid(gx2) * 2 - 1
        gy2s = jax.nn.sigmoid(gy2) * 2 - 1
        for i in range(3):
            for j in range(3):
                gx_terms.append(
                    jnp.mean(gx1s[:, j] ** 2 * gx2s[:, i] ** 2) ** 0.25)
                gy_terms.append(
                    jnp.mean(gy1s[:, j] ** 2 * gy2s[:, i] ** 2) ** 0.25)
        img1 = pool(img1)
        img2 = pool(img2)
    loss = sum(gx_terms) / (level * 9) + sum(gy_terms) / (level * 9)
    return loss / 2.0


if __name__ == "__main__":
    key = jax.random.PRNGKey(0)
    k1, k2 = jax.random.split(key)
    # Module semantics require 3 channels (it loops over channels 0..2).
    B, C, H, W = 2, 3, 16, 16
    img1 = jax.random.normal(k1, (B, C, H, W), dtype=jnp.float32)
    img2 = jax.random.normal(k2, (B, C, H, W), dtype=jnp.float32)

    out = jax.block_until_ready(exclusion_loss(img1, img2, level=3))
    ref = jax.block_until_ready(_reference_exclusion_loss(img1, img2, level=3))
    assert jnp.allclose(out, ref, rtol=1e-4, atol=1e-4), (out, ref)

    print("KERNEL_OK")
</pallas_src>

<mosaic_0001>
module attributes {stable_mosaic.version = 11 : i64} {
  func.func @_excl_kernel(%arg0: i32, %arg1: i32, %arg2: memref<1x3x8x128xf32, #tpu.memory_space<vmem>>, %arg3: memref<1x3x8x128xf32, #tpu.memory_space<vmem>>, %arg4: memref<1x9x8x128xf32, #tpu.memory_space<vmem>>) attributes {dimension_semantics = [#tpu.dimension_semantics<parallel>, #tpu.dimension_semantics<arbitrary>], iteration_bounds = array<i64: 2, 3>, scalar_prefetch = 0 : i64, scratch_operands = 0 : i64, tpu.core_type = #tpu.core_type<tc>, window_params = [{transform_indices = @transform_0, window_bounds = array<i64: 1, 3, 8, 128>}, {transform_indices = @transform_1, window_bounds = array<i64: 1, 3, 8, 128>}, {transform_indices = @transform_2, window_bounds = array<i64: 1, 9, 8, 128>}]} {
    %c0_i32 = arith.constant 0 : i32
    %0 = arith.cmpi eq, %arg1, %c0_i32 : i32
    %c1_i32 = arith.constant 1 : i32
    %1 = arith.cmpi eq, %arg1, %c1_i32 : i32
    %2 = arith.ori %0, %1 : i1
    %c2_i32 = arith.constant 2 : i32
    %3 = arith.cmpi eq, %arg1, %c2_i32 : i32
    %4 = arith.ori %2, %3 : i1
    %5 = arith.extui %4 : i1 to i32
    %c0_i32_0 = arith.constant 0 : i32
    %6 = arith.cmpi ne, %5, %c0_i32_0 : i32
    scf.if %6 {
      %cst_73 = arith.constant 0.000000e+00 : f32
      %118 = vector.broadcast %cst_73 : f32 to vector<1x9x8x128xf32>
      %c0_74 = arith.constant 0 : index
      %c0_75 = arith.constant 0 : index
      %c0_76 = arith.constant 0 : index
      %c0_77 = arith.constant 0 : index
      %119 = vector.load %arg4[%c0_74, %c0_75, %c0_76, %c0_77] : memref<1x9x8x128xf32, #tpu.memory_space<vmem>>, vector<1x9x8x128xf32>
      tpu.vector_store %arg4[%c0_74, %c0_75, %c0_76, %c0_77], %118 {strides = array<i32>} : memref<1x9x8x128xf32, #tpu.memory_space<vmem>>, vector<1x9x8x128xf32>,
    } else {
    }
    %c0 = arith.constant 0 : index
    %c0_1 = arith.constant 0 : index
    %c0_2 = arith.constant 0 : index
    %c0_3 = arith.constant 0 : index
    %7 = vector.load %arg2[%c0, %c0_1, %c0_2, %c0_3] : memref<1x3x8x128xf32, #tpu.memory_space<vmem>>, vector<1x3x8x128xf32>
    %8 = vector.shape_cast %7 : vector<1x3x8x128xf32> to vector<3x8x128xf32>
    %cst = arith.constant 5.000000e-01 : f32
    %9 = vector.broadcast %cst : f32 to vector<3x8x128xf32>
    %10 = arith.mulf %9, %8 : vector<3x8x128xf32>
    %11 = math.tanh %10 : vector<3x8x128xf32>
    %12 = arith.mulf %11, %11 : vector<3x8x128xf32>
    %c0_4 = arith.constant 0 : index
    %c0_5 = arith.constant 0 : index
    %c0_6 = arith.constant 0 : index
    %c0_7 = arith.constant 0 : index
    %13 = vector.load %arg3[%c0_4, %c0_5, %c0_6, %c0_7] : memref<1x3x8x128xf32, #tpu.memory_space<vmem>>, vector<1x3x8x128xf32>
    %14 = vector.shape_cast %13 : vector<1x3x8x128xf32> to vector<3x8x128xf32>
    %cst_8 = arith.constant 5.000000e-01 : f32
    %15 = vector.broadcast %cst_8 : f32 to vector<3x8x128xf32>
    %16 = arith.mulf %15, %14 : vector<3x8x128xf32>
    %17 = math.tanh %16 : vector<3x8x128xf32>
    %18 = arith.mulf %17, %17 : vector<3x8x128xf32>
    %19 = vector.extract_strided_slice %12 {offsets = [0, 0, 0], sizes = [1, 8, 128], strides = [1, 1, 1]} : vector<3x8x128xf32> to vector<1x8x128xf32>
    %20 = vector.shape_cast %19 : vector<1x8x128xf32> to vector<8x128xf32>
    %21 = vector.extract_strided_slice %18 {offsets = [0, 0, 0], sizes = [1, 8, 128], strides = [1, 1, 1]} : vector<3x8x128xf32> to vector<1x8x128xf32>
    %22 = vector.shape_cast %21 : vector<1x8x128xf32> to vector<8x128xf32>
    %23 = arith.mulf %20, %22 : vector<8x128xf32>
    %c0_9 = arith.constant 0 : index
    %c0_10 = arith.constant 0 : index
    %c0_11 = arith.constant 0 : index
    %c0_12 = arith.constant 0 : index
    %24 = vector.load %arg4[%c0_9, %c0_10, %c0_11, %c0_12] : memref<1x9x8x128xf32, #tpu.memory_space<vmem>>, vector<1x1x8x128xf32>
    %25 = vector.shape_cast %24 : vector<1x1x8x128xf32> to vector<8x128xf32>
    %26 = arith.addf %25, %23 : vector<8x128xf32>
    %c0_13 = arith.constant 0 : index
    %c0_14 = arith.constant 0 : index
    %c0_15 = arith.constant 0 : index
    %c0_16 = arith.constant 0 : index
    %27 = vector.load %arg4[%c0_13, %c0_14, %c0_15, %c0_16] : memref<1x9x8x128xf32, #tpu.memory_space<vmem>>, vector<1x1x8x128xf32>
    %28 = vector.shape_cast %27 : vector<1x1x8x128xf32> to vector<8x128xf32>
    %29 = vector.shape_cast %26 : vector<8x128xf32> to vector<1x1x8x128xf32>
    tpu.vector_store %arg4[%c0_13, %c0_14, %c0_15, %c0_16], %29 {strides = array<i32>} : memref<1x9x8x128xf32, #tpu.memory_space<vmem>>, vector<1x1x8x128xf32>,
    %30 = vector.extract_strided_slice %12 {offsets = [1, 0, 0], sizes = [1, 8, 128], strides = [1, 1, 1]} : vector<3x8x128xf32> to vector<1x8x128xf32>
    %31 = vector.shape_cast %30 : vector<1x8x128xf32> to vector<8x128xf32>
    %32 = vector.extract_strided_slice %18 {offsets = [0, 0, 0], sizes = [1, 8, 128], strides = [1, 1, 1]} : vector<3x8x128xf32> to vector<1x8x128xf32>
    %33 = vector.shape_cast %32 : vector<1x8x128xf32> to vector<8x128xf32>
    %34 = arith.mulf %31, %33 : vector<8x128xf32>
    %c0_17 = arith.constant 0 : index
    %c1 = arith.constant 1 : index
    %c0_18 = arith.constant 0 : index
    %c0_19 = arith.constant 0 : index
    %35 = vector.load %arg4[%c0_17, %c1, %c0_18, %c0_19] : memref<1x9x8x128xf32, #tpu.memory_space<vmem>>, vector<1x1x8x128xf32>
    %36 = vector.shape_cast %35 : vector<1x1x8x128xf32> to vector<8x128xf32>
    %37 = arith.addf %36, %34 : vector<8x128xf32>
    %c0_20 = arith.constant 0 : index
    %c1_21 = arith.constant 1 : index
    %c0_22 = arith.constant 0 : index
    %c0_23 = arith.constant 0 : index
    %38 = vector.load %arg4[%c0_20, %c1_21, %c0_22, %c0_23] : memref<1x9x8x128xf32, #tpu.memory_space<vmem>>, vector<1x1x8x128xf32>
    %39 = vector.shape_cast %38 : vector<1x1x8x128xf32> to vector<8x128xf32>
    %40 = vector.shape_cast %37 : vector<8x128xf32> to vector<1x1x8x128xf32>
    tpu.vector_store %arg4[%c0_20, %c1_21, %c0_22, %c0_23], %40 {strides = array<i32>} : memref<1x9x8x128xf32, #tpu.memory_space<vmem>>, vector<1x1x8x128xf32>,
    %41 = vector.extract_strided_slice %12 {offsets = [2, 0, 0], sizes = [1, 8, 128], strides = [1, 1, 1]} : vector<3x8x128xf32> to vector<1x8x128xf32>
    %42 = vector.shape_cast %41 : vector<1x8x128xf32> to vector<8x128xf32>
    %43 = vector.extract_strided_slice %18 {offsets = [0, 0, 0], sizes = [1, 8, 128], strides = [1, 1, 1]} : vector<3x8x128xf32> to vector<1x8x128xf32>
    %44 = vector.shape_cast %43 : vector<1x8x128xf32> to vector<8x128xf32>
    %45 = arith.mulf %42, %44 : vector<8x128xf32>
    %c0_24 = arith.constant 0 : index
    %c2 = arith.constant 2 : index
    %c0_25 = arith.constant 0 : index
    %c0_26 = arith.constant 0 : index
    %46 = vector.load %arg4[%c0_24, %c2, %c0_25, %c0_26] : memref<1x9x8x128xf32, #tpu.memory_space<vmem>>, vector<1x1x8x128xf32>
    %47 = vector.shape_cast %46 : vector<1x1x8x128xf32> to vector<8x128xf32>
    %48 = arith.addf %47, %45 : vector<8x128xf32>
    %c0_27 = arith.constant 0 : index
    %c2_28 = arith.constant 2 : index
    %c0_29 = arith.constant 0 : index
    %c0_30 = arith.constant 0 : index
    %49 = vector.load %arg4[%c0_27, %c2_28, %c0_29, %c0_30] : memref<1x9x8x128xf32, #tpu.memory_space<vmem>>, vector<1x1x8x128xf32>
    %50 = vector.shape_cast %49 : vector<1x1x8x128xf32> to vector<8x128xf32>
    %51 = vector.shape_cast %48 : vector<8x128xf32> to vector<1x1x8x128xf32>
    tpu.vector_store %arg4[%c0_27, %c2_28, %c0_29, %c0_30], %51 {strides = array<i32>} : memref<1x9x8x128xf32, #tpu.memory_space<vmem>>, vector<1x1x8x128xf32>,
    %52 = vector.extract_strided_slice %12 {offsets = [0, 0, 0], sizes = [1, 8, 128], strides = [1, 1, 1]} : vector<3x8x128xf32> to vector<1x8x128xf32>
    %53 = vector.shape_cast %52 : vector<1x8x128xf32> to vector<8x128xf32>
    %54 = vector.extract_strided_slice %18 {offsets = [1, 0, 0], sizes = [1, 8, 128], strides = [1, 1, 1]} : vector<3x8x128xf32> to vector<1x8x128xf32>
    %55 = vector.shape_cast %54 : vector<1x8x128xf32> to vector<8x128xf32>
    %56 = arith.mulf %53, %55 : vector<8x128xf32>
    %c0_31 = arith.constant 0 : index
    %c3 = arith.constant 3 : index
    %c0_32 = arith.constant 0 : index
    %c0_33 = arith.constant 0 : index
    %57 = vector.load %arg4[%c0_31, %c3, %c0_32, %c0_33] : memref<1x9x8x128xf32, #tpu.memory_space<vmem>>, vector<1x1x8x128xf32>
    %58 = vector.shape_cast %57 : vector<1x1x8x128xf32> to vector<8x128xf32>
    %59 = arith.addf %58, %56 : vector<8x128xf32>
    %c0_34 = arith.constant 0 : index
    %c3_35 = arith.constant 3 : index
    %c0_36 = arith.constant 0 : index
    %c0_37 = arith.constant 0 : index
    %60 = vector.load %arg4[%c0_34, %c3_35, %c0_36, %c0_37] : memref<1x9x8x128xf32, #tpu.memory_space<vmem>>, vector<1x1x8x128xf32>
    %61 = vector.shape_cast %60 : vector<1x1x8x128xf32> to vector<8x128xf32>
    %62 = vector.shape_cast %59 : vector<8x128xf32> to vector<1x1x8x128xf32>
    tpu.vector_store %arg4[%c0_34, %c3_35, %c0_36, %c0_37], %62 {strides = array<i32>} : memref<1x9x8x128xf32, #tpu.memory_space<vmem>>, vector<1x1x8x128xf32>,
    %63 = vector.extract_strided_slice %12 {offsets = [1, 0, 0], sizes = [1, 8, 128], strides = [1, 1, 1]} : vector<3x8x128xf32> to vector<1x8x128xf32>
    %64 = vector.shape_cast %63 : vector<1x8x128xf32> to vector<8x128xf32>
    %65 = vector.extract_strided_slice %18 {offsets = [1, 0, 0], sizes = [1, 8, 128], strides = [1, 1, 1]} : vector<3x8x128xf32> to vector<1x8x128xf32>
    %66 = vector.shape_cast %65 : vector<1x8x128xf32> to vector<8x128xf32>
    %67 = arith.mulf %64, %66 : vector<8x128xf32>
    %c0_38 = arith.constant 0 : index
    %c4 = arith.constant 4 : index
    %c0_39 = arith.constant 0 : index
    %c0_40 = arith.constant 0 : index
    %68 = vector.load %arg4[%c0_38, %c4, %c0_39, %c0_40] : memref<1x9x8x128xf32, #tpu.memory_space<vmem>>, vector<1x1x8x128xf32>
    %69 = vector.shape_cast %68 : vector<1x1x8x128xf32> to vector<8x128xf32>
    %70 = arith.addf %69, %67 : vector<8x128xf32>
    %c0_41 = arith.constant 0 : index
    %c4_42 = arith.constant 4 : index
    %c0_43 = arith.constant 0 : index
    %c0_44 = arith.constant 0 : index
    %71 = vector.load %arg4[%c0_41, %c4_42, %c0_43, %c0_44] : memref<1x9x8x128xf32, #tpu.memory_space<vmem>>, vector<1x1x8x128xf32>
    %72 = vector.shape_cast %71 : vector<1x1x8x128xf32> to vector<8x128xf32>
    %73 = vector.shape_cast %70 : vector<8x128xf32> to vector<1x1x8x128xf32>
    tpu.vector_store %arg4[%c0_41, %c4_42, %c0_43, %c0_44], %73 {strides = array<i32>} : memref<1x9x8x128xf32, #tpu.memory_space<vmem>>, vector<1x1x8x128xf32>,
    %74 = vector.extract_strided_slice %12 {offsets = [2, 0, 0], sizes = [1, 8, 128], strides = [1, 1, 1]} : vector<3x8x128xf32> to vector<1x8x128xf32>
    %75 = vector.shape_cast %74 : vector<1x8x128xf32> to vector<8x128xf32>
    %76 = vector.extract_strided_slice %18 {offsets = [1, 0, 0], sizes = [1, 8, 128], strides = [1, 1, 1]} : vector<3x8x128xf32> to vector<1x8x128xf32>
    %77 = vector.shape_cast %76 : vector<1x8x128xf32> to vector<8x128xf32>
    %78 = arith.mulf %75, %77 : vector<8x128xf32>
    %c0_45 = arith.constant 0 : index
    %c5 = arith.constant 5 : index
    %c0_46 = arith.constant 0 : index
    %c0_47 = arith.constant 0 : index
    %79 = vector.load %arg4[%c0_45, %c5, %c0_46, %c0_47] : memref<1x9x8x128xf32, #tpu.memory_space<vmem>>, vector<1x1x8x128xf32>
    %80 = vector.shape_cast %79 : vector<1x1x8x128xf32> to vector<8x128xf32>
    %81 = arith.addf %80, %78 : vector<8x128xf32>
    %c0_48 = arith.constant 0 : index
    %c5_49 = arith.constant 5 : index
    %c0_50 = arith.constant 0 : index
    %c0_51 = arith.constant 0 : index
    %82 = vector.load %arg4[%c0_48, %c5_49, %c0_50, %c0_51] : memref<1x9x8x128xf32, #tpu.memory_space<vmem>>, vector<1x1x8x128xf32>
    %83 = vector.shape_cast %82 : vector<1x1x8x128xf32> to vector<8x128xf32>
    %84 = vector.shape_cast %81 : vector<8x128xf32> to vector<1x1x8x128xf32>
    tpu.vector_store %arg4[%c0_48, %c5_49, %c0_50, %c0_51], %84 {strides = array<i32>} : memref<1x9x8x128xf32, #tpu.memory_space<vmem>>, vector<1x1x8x128xf32>,
    %85 = vector.extract_strided_slice %12 {offsets = [0, 0, 0], sizes = [1, 8, 128], strides = [1, 1, 1]} : vector<3x8x128xf32> to vector<1x8x128xf32>
    %86 = vector.shape_cast %85 : vector<1x8x128xf32> to vector<8x128xf32>
    %87 = vector.extract_strided_slice %18 {offsets = [2, 0, 0], sizes = [1, 8, 128], strides = [1, 1, 1]} : vector<3x8x128xf32> to vector<1x8x128xf32>
    %88 = vector.shape_cast %87 : vector<1x8x128xf32> to vector<8x128xf32>
    %89 = arith.mulf %86, %88 : vector<8x128xf32>
    %c0_52 = arith.constant 0 : index
    %c6 = arith.constant 6 : index
    %c0_53 = arith.constant 0 : index
    %c0_54 = arith.constant 0 : index
    %90 = vector.load %arg4[%c0_52, %c6, %c0_53, %c0_54] : memref<1x9x8x128xf32, #tpu.memory_space<vmem>>, vector<1x1x8x128xf32>
    %91 = vector.shape_cast %90 : vector<1x1x8x128xf32> to vector<8x128xf32>
    %92 = arith.addf %91, %89 : vector<8x128xf32>
    %c0_55 = arith.constant 0 : index
    %c6_56 = arith.constant 6 : index
    %c0_57 = arith.constant 0 : index
    %c0_58 = arith.constant 0 : index
    %93 = vector.load %arg4[%c0_55, %c6_56, %c0_57, %c0_58] : memref<1x9x8x128xf32, #tpu.memory_space<vmem>>, vector<1x1x8x128xf32>
    %94 = vector.shape_cast %93 : vector<1x1x8x128xf32> to vector<8x128xf32>
    %95 = vector.shape_cast %92 : vector<8x128xf32> to vector<1x1x8x128xf32>
    tpu.vector_store %arg4[%c0_55, %c6_56, %c0_57, %c0_58], %95 {strides = array<i32>} : memref<1x9x8x128xf32, #tpu.memory_space<vmem>>, vector<1x1x8x128xf32>,
    %96 = vector.extract_strided_slice %12 {offsets = [1, 0, 0], sizes = [1, 8, 128], strides = [1, 1, 1]} : vector<3x8x128xf32> to vector<1x8x128xf32>
    %97 = vector.shape_cast %96 : vector<1x8x128xf32> to vector<8x128xf32>
    %98 = vector.extract_strided_slice %18 {offsets = [2, 0, 0], sizes = [1, 8, 128], strides = [1, 1, 1]} : vector<3x8x128xf32> to vector<1x8x128xf32>
    %99 = vector.shape_cast %98 : vector<1x8x128xf32> to vector<8x128xf32>
    %100 = arith.mulf %97, %99 : vector<8x128xf32>
    %c0_59 = arith.constant 0 : index
    %c7 = arith.constant 7 : index
    %c0_60 = arith.constant 0 : index
    %c0_61 = arith.constant 0 : index
    %101 = vector.load %arg4[%c0_59, %c7, %c0_60, %c0_61] : memref<1x9x8x128xf32, #tpu.memory_space<vmem>>, vector<1x1x8x128xf32>
    %102 = vector.shape_cast %101 : vector<1x1x8x128xf32> to vector<8x128xf32>
    %103 = arith.addf %102, %100 : vector<8x128xf32>
    %c0_62 = arith.constant 0 : index
    %c7_63 = arith.constant 7 : index
    %c0_64 = arith.constant 0 : index
    %c0_65 = arith.constant 0 : index
    %104 = vector.load %arg4[%c0_62, %c7_63, %c0_64, %c0_65] : memref<1x9x8x128xf32, #tpu.memory_space<vmem>>, vector<1x1x8x128xf32>
    %105 = vector.shape_cast %104 : vector<1x1x8x128xf32> to vector<8x128xf32>
    %106 = vector.shape_cast %103 : vector<8x128xf32> to vector<1x1x8x128xf32>
    tpu.vector_store %arg4[%c0_62, %c7_63, %c0_64, %c0_65], %106 {strides = array<i32>} : memref<1x9x8x128xf32, #tpu.memory_space<vmem>>, vector<1x1x8x128xf32>,
    %107 = vector.extract_strided_slice %12 {offsets = [2, 0, 0], sizes = [1, 8, 128], strides = [1, 1, 1]} : vector<3x8x128xf32> to vector<1x8x128xf32>
    %108 = vector.shape_cast %107 : vector<1x8x128xf32> to vector<8x128xf32>
    %109 = vector.extract_strided_slice %18 {offsets = [2, 0, 0], sizes = [1, 8, 128], strides = [1, 1, 1]} : vector<3x8x128xf32> to vector<1x8x128xf32>
    %110 = vector.shape_cast %109 : vector<1x8x128xf32> to vector<8x128xf32>
    %111 = arith.mulf %108, %110 : vector<8x128xf32>
    %c0_66 = arith.constant 0 : index
    %c8 = arith.constant 8 : index
    %c0_67 = arith.constant 0 : index
    %c0_68 = arith.constant 0 : index
    %112 = vector.load %arg4[%c0_66, %c8, %c0_67, %c0_68] : memref<1x9x8x128xf32, #tpu.memory_space<vmem>>, vector<1x1x8x128xf32>
    %113 = vector.shape_cast %112 : vector<1x1x8x128xf32> to vector<8x128xf32>
    %114 = arith.addf %113, %111 : vector<8x128xf32>
    %c0_69 = arith.constant 0 : index
    %c8_70 = arith.constant 8 : index
    %c0_71 = arith.constant 0 : index
    %c0_72 = arith.constant 0 : index
    %115 = vector.load %arg4[%c0_69, %c8_70, %c0_71, %c0_72] : memref<1x9x8x128xf32, #tpu.memory_space<vmem>>, vector<1x1x8x128xf32>
    %116 = vector.shape_cast %115 : vector<1x1x8x128xf32> to vector<8x128xf32>
    %117 = vector.shape_cast %114 : vector<8x128xf32> to vector<1x1x8x128xf32>
    tpu.vector_store %arg4[%c0_69, %c8_70, %c0_71, %c0_72], %117 {strides = array<i32>} : memref<1x9x8x128xf32, #tpu.memory_space<vmem>>, vector<1x1x8x128xf32>,
    return
  }
  func.func @transform_0(%arg0: i32, %arg1: i32) -> (i32, i32, i32, i32) {
    %c0_i32 = arith.constant 0 : i32
    %c0_i32_0 = arith.constant 0 : i32
    %c0_i32_1 = arith.constant 0 : i32
    return %arg0, %c0_i32, %arg1, %c0_i32_0 : i32, i32, i32, i32
  }
  func.func @transform_1(%arg0: i32, %arg1: i32) -> (i32, i32, i32, i32) {
    %c0_i32 = arith.constant 0 : i32
    %c0_i32_0 = arith.constant 0 : i32
    %c0_i32_1 = arith.constant 0 : i32
    return %arg0, %c0_i32, %arg1, %c0_i32_0 : i32, i32, i32, i32
  }
  func.func @transform_2(%arg0: i32, %arg1: i32) -> (i32, i32, i32, i32) {
    %c1_i32 = arith.constant 1 : i32
    %0 = arith.cmpi sge, %arg1, %c1_i32 : i32
    %1 = arith.extui %0 : i1 to i32
    %c0_i32 = arith.constant 0 : i32
    %2 = arith.addi %c0_i32, %1 : i32
    %c2_i32 = arith.constant 2 : i32
    %3 = arith.cmpi sge, %arg1, %c2_i32 : i32
    %4 = arith.extui %3 : i1 to i32
    %5 = arith.addi %2, %4 : i32
    %c0_i32_0 = arith.constant 0 : i32
    %c0_i32_1 = arith.constant 0 : i32
    %c0_i32_2 = arith.constant 0 : i32
    return %arg0, %5, %c0_i32_0, %c0_i32_1 : i32, i32, i32, i32
  }
}

</mosaic_0001>

<llo_original>
// kernel: exclusion_loss.1
$region0: #{exclusion_loss.1}
  #allocation0 [shape = 'u32[]', space=smem, size = 0x4, offset = 0x4, fixed_abs, tag = 'smem constant byte address 0x4 - core index']
  #allocation1 [shape = 'u32[144,128]{1,0:T(1,128)}', space=vmem, size = 0x12000, scoped, tag = 'internal scratch']
  %s0 = inlined_call_operand.vmem [shape: f32[2,3,24,128], index: 0, kind: input, shape index: {}]
  %s1 = inlined_call_operand.vmem [shape: f32[2,3,24,128], index: 1, kind: input, shape index: {}]
  %s2 = inlined_call_operand.vmem [shape: f32[2,27,8,128], index: 2, kind: output, shape index: {}]
  %s3 = sld [smem:[#allocation0]]
  $region121: #{exclusion_loss.1} parent=0
    _
  %s5 = ssub.s32 1, %s3
  %s6 = scalar_select 0, %s5, %s3
  $region1: #{exclusion_loss.1} parent=0
    #allocation2 [shape = 'u8[24576]{0}', space=vmem, size = 0x6000, scoped, tag = 'input window, operand 0']
    #allocation3 [shape = 'u8[24576]{0}', space=vmem, size = 0x6000, scoped, tag = 'input window, operand 1']
    loop: start=0, step=1, limit=8
    $region2: #{exclusion_loss.1} parent=1 // loop_pre_header
      _
    $region3: #{exclusion_loss.1} parent=1 // loop_header
      %s8 = sphi 0, %s12
      %p9 = scmp.ge.s32.totalorder %s8, 8
      %s15 = sphi 0, %s27
      %s16 = sphi 0, %s23
      %s17 = sphi 0, %s15
      %s18 = sphi 0, %s16
      %s19 = sphi 0, %s17
      %s20 = sphi 0, %s18
      %s32 = sphi 0, %s34
      %s35 = sphi 0, %s32
      %s36 = sphi 0, %s35
      %s52 = sphi 0, %s36
      %s60 = sphi 0, %s62
      %s63 = sphi 0, %s60
      %s64 = sphi 0, %s63
      %s80 = sphi 0, %s64
      %s98 = sphi 0, %s100
      %s101 = sphi 0, %s98
      %s102 = sphi 0, %s101
      %s118 = sphi 0, %s102
    $region4: #{exclusion_loss.1} parent=1 // loop_header_branch
      %11 = sbr.rel (%p9) target = $region8
    $region5: #{exclusion_loss.1} parent=1 // loop_body
      %s13 = ssub.s32 %s8, 1
      %s14 = ssub.s32 %s8, 2
      %s21 = sadd.s32 1, %s16
      %p22 = scmp.ge.s32.totalorder %s21, 3
      %s23 = scalar_select %p22, 0, %s21
      %s24 = sadd.s32 1, %s15
      %s25 = scalar_select %p22, %s24, %s15
      %p26 = scmp.ge.s32.totalorder %s25, 2
      %s27 = scalar_select %p26, 0, %s25
      %s28 = ssub.s32 %s15, %s27
      %s29 = ssub.s32 %s16, %s23
      %s30 = sor.u32 %s28, %s29
      %p31 = scmp.eq.s32.totalorder %s30, 0
      %s33 = sadd.s32 %s32, 1
      %s34 = scalar_select %p31, %s32, %s33
      %p37 = pneg %p31
      %p38 = scmp.eq.s32.totalorder %s8, 5
      %p39 = por %p37, %p38
      %p40 = scmp.ne.s32.totalorder %s32, %s35
      %p41 = scmp.eq.s32.totalorder %s8, 0
      %p42 = por %p40, %p41
      %p43 = scmp.ne.s32.totalorder %s32, %s35
      %p44 = scmp.eq.s32.totalorder %s13, 5
      %p45 = por %p43, %p44
      %p46 = scmp.ne.s32.totalorder %s35, %s36
      %p47 = scmp.eq.s32.totalorder %s13, 0
      %p48 = por %p46, %p47
      %p49 = scmp.ne.s32.totalorder %s35, %s36
      %p50 = scmp.eq.s32.totalorder %s14, 5
      %p51 = por %p49, %p50
      %p53 = scmp.ne.s32.totalorder %s36, %s52
      %p54 = scmp.eq.s32.totalorder %s14, 0
      %p55 = por %p53, %p54
      %s56 = ssub.s32 %s15, %s27
      %s57 = ssub.s32 %s16, %s23
      %s58 = sor.u32 %s56, %s57
      %p59 = scmp.eq.s32.totalorder %s58, 0
      %s61 = sadd.s32 %s60, 1
      %s62 = scalar_select %p59, %s60, %s61
      %p65 = pneg %p59
      %p66 = scmp.eq.s32.totalorder %s8, 5
      %p67 = por %p65, %p66
      %p68 = scmp.ne.s32.totalorder %s60, %s63
      %p69 = scmp.eq.s32.totalorder %s8, 0
      %p70 = por %p68, %p69
      %p71 = scmp.ne.s32.totalorder %s60, %s63
      %p72 = scmp.eq.s32.totalorder %s13, 5
      %p73 = por %p71, %p72
      %p74 = scmp.ne.s32.totalorder %s63, %s64
      %p75 = scmp.eq.s32.totalorder %s13, 0
      %p76 = por %p74, %p75
      %p77 = scmp.ne.s32.totalorder %s63, %s64
      %p78 = scmp.eq.s32.totalorder %s14, 5
      %p79 = por %p77, %p78
      %p81 = scmp.ne.s32.totalorder %s64, %s80
      %p82 = scmp.eq.s32.totalorder %s14, 0
      %p83 = por %p81, %p82
      %p84 = scmp.ge.s32.totalorder %s16, 1
      %s85 = scalar_select %p84, 1, 0
      %p86 = scmp.ge.s32.totalorder %s16, 2
      %s87 = scalar_select %p86, 1, 0
      %s88 = sadd.s32 %s85, %s87
      %p89 = scmp.ge.s32.totalorder %s23, 1
      %s90 = scalar_select %p89, 1, 0
      %p91 = scmp.ge.s32.totalorder %s23, 2
      %s92 = scalar_select %p91, 1, 0
      %s93 = sadd.s32 %s90, %s92
      %s94 = ssub.s32 %s15, %s27
      %s95 = ssub.s32 %s88, %s93
      %s96 = sor.u32 %s94, %s95
      %p97 = scmp.eq.s32.totalorder %s96, 0
      %s99 = sadd.s32 %s98, 1
      %s100 = scalar_select %p97, %s98, %s99
      %p103 = pneg %p97
      %p104 = scmp.eq.s32.totalorder %s8, 5
      %p105 = por %p103, %p104
      %p106 = scmp.ne.s32.totalorder %s98, %s101
      %p107 = scmp.eq.s32.totalorder %s8, 0
      %p108 = por %p106, %p107
      %p109 = scmp.ne.s32.totalorder %s98, %s101
      %p110 = scmp.eq.s32.totalorder %s13, 5
      %p111 = por %p109, %p110
      %p112 = scmp.ne.s32.totalorder %s101, %s102
      %p113 = scmp.eq.s32.totalorder %s13, 0
      %p114 = por %p112, %p113
      %p115 = scmp.ne.s32.totalorder %s101, %s102
      %p116 = scmp.eq.s32.totalorder %s14, 5
      %p117 = por %p115, %p116
      %p119 = scmp.ne.s32.totalorder %s102, %s118
      %p120 = scmp.eq.s32.totalorder %s14, 0
      %p121 = por %p119, %p120
      %p122 = scmp.le.s32.totalorder 1, %s8
      %p123 = scmp.lt.s32.totalorder %s8, 7
      %p124 = pnand %p122, %p123
      %p125 = pneg %p124
      // Predicated region
      $region9: #{exclusion_loss.1} parent=5 // pred_check
        _
      $region10: #{exclusion_loss.1} parent=5 // pred_check_branch
        %127 = sbr.rel (%p124) target = $region12
      $region11: #{exclusion_loss.1} parent=5 // pred_region
        %s128 = ssub.s32 %s8, 1
      $region12: #{exclusion_loss.1} parent=5 // pred_fallthru
        _
      %p129 = scmp.lt.s32.totalorder %s8, 6
      // Predicated region
      $region13: #{exclusion_loss.1} parent=5 // pred_check
        %p130 = pneg %p129
      $region14: #{exclusion_loss.1} parent=5 // pred_check_branch
        %132 = sbr.rel (%p130) target = $region16
      $region15: #{exclusion_loss.1} parent=5 // pred_region
        // Predicated region
        $region17: #{exclusion_loss.1} parent=15 // pred_check
          %p133 = pneg %p42
        $region18: #{exclusion_loss.1} parent=15 // pred_check_branch
          %135 = sbr.rel (%p133) target = $region20
        $region19: #{exclusion_loss.1} parent=15 // pred_region
          %s136 = sand.u32 %s32, 1
          %s137 = sand.u32 %s32, 1
          %s138 = smul.addr %s137, 24
          %s139 = scalar_lea.vmem [#allocation2], %s138
          %s140 = smul.addr %s15, 9
          %s141 = sadd.s32 %s16, %s140
          %s142 = smul.addr %s141, 8
          %s143 = scalar_lea.vmem %s0, %s142
          // Predicated region
          $region21: #{exclusion_loss.1} parent=19 // pred_check
            _
          $region22: #{exclusion_loss.1} parent=19 // pred_check_branch
            %145 = sbr.rel (0) target = $region24
          $region23: #{exclusion_loss.1} parent=19 // pred_region
            // Predicated region
            $region25: #{exclusion_loss.1} parent=23 // pred_check
              _
            $region26: #{exclusion_loss.1} parent=23 // pred_check_branch
              %147 = sbr.rel (0) target = $region28
            $region27: #{exclusion_loss.1} parent=23 // pred_region
              // Predicated region
              $region40: #{exclusion_loss.1} parent=27 // pred_check
                _
              $region41: #{exclusion_loss.1} parent=27 // pred_check_branch
                %166 = sbr.rel (0) target = $region43
              $region42: #{exclusion_loss.1} parent=27 // pred_region
                loop: start=0, step=1, limit=1
                $region44: #{exclusion_loss.1} parent=42 // loop_pre_header
                  _
                $region45: #{exclusion_loss.1} parent=42 // loop_header
                  %s168 = sphi 0, %s172
                  %p169 = scmp.ge.s32.totalorder %s168, 1
                  %s173 = sphi %s143, %s143
                  %s174 = sphi %s139, %s139
                $region46: #{exclusion_loss.1} parent=42 // loop_header_branch
                  %171 = sbr.rel (%p169) target = $region50
                $region47: #{exclusion_loss.1} parent=42 // loop_body
                  %v175 = vld [vmem:[%s173] sm:$0xff]
                  %176 = vst [vmem:[%s174] sm:$0xff] %v175
                  %v177 = vld [vmem:[%s173 + $0x18] sm:$0xff]
                  %178 = vst [vmem:[%s174 + $0x8] sm:$0xff] %v177
                  %v179 = vld [vmem:[%s173 + $0x30] sm:$0xff]
                  %180 = vst [vmem:[%s174 + $0x10] sm:$0xff] %v179
                $region48: #{exclusion_loss.1} parent=42 // loop_footer
                  %s172 = sadd.s32 1, %s168
                $region49: #{exclusion_loss.1} parent=42 // loop_footer_branch
                  %167 = sbr.rel target = $region45
                $region50: #{exclusion_loss.1} parent=42 // loop_exit
                  _
              $region43: #{exclusion_loss.1} parent=27 // pred_fallthru
                _
              // Predicated region
              $region51: #{exclusion_loss.1} parent=27 // pred_check
                _
              $region52: #{exclusion_loss.1} parent=27 // pred_check_branch
                %182 = sbr.rel target = $region54
              $region53: #{exclusion_loss.1} parent=27 // pred_region
                _
              $region54: #{exclusion_loss.1} parent=27 // pred_fallthru
                _
            $region28: #{exclusion_loss.1} parent=23 // pred_fallthru
              _
            // Predicated region
            $region29: #{exclusion_loss.1} parent=23 // pred_check
              _
            $region30: #{exclusion_loss.1} parent=23 // pred_check_branch
              %149 = sbr.rel target = $region32
            $region31: #{exclusion_loss.1} parent=23 // pred_region
              loop: start=0, step=1, limit=1
              $region33: #{exclusion_loss.1} parent=31 // loop_pre_header
                _
              $region34: #{exclusion_loss.1} parent=31 // loop_header
                %s152 = sphi 0, %s156
                %p153 = scmp.ge.s32.totalorder %s152, 1
                %s157 = sphi %s143, %s143
                %s158 = sphi %s139, %s139
              $region35: #{exclusion_loss.1} parent=31 // loop_header_branch
                %155 = sbr.rel (%p153) target = $region39
              $region36: #{exclusion_loss.1} parent=31 // loop_body
                %v159 = vld [vmem:[%s157] sm:$0xff]
                %160 = vst [vmem:[%s158] sm:$0xff] %v159
                %v161 = vld [vmem:[%s157 + $0x18] sm:$0xff]
                %162 = vst [vmem:[%s158 + $0x8] sm:$0xff] %v161
                %v163 = vld [vmem:[%s157 + $0x30] sm:$0xff]
                %164 = vst [vmem:[%s158 + $0x10] sm:$0xff] %v163
              $region37: #{exclusion_loss.1} parent=31 // loop_footer
                %s156 = sadd.s32 1, %s152
              $region38: #{exclusion_loss.1} parent=31 // loop_footer_branch
                %151 = sbr.rel target = $region34
              $region39: #{exclusion_loss.1} parent=31 // loop_exit
                _
            $region32: #{exclusion_loss.1} parent=23 // pred_fallthru
              _
          $region24: #{exclusion_loss.1} parent=19 // pred_fallthru
            _
          %183 = vnop
        $region20: #{exclusion_loss.1} parent=15 // pred_fallthru
          _
        // Predicated region
        $region55: #{exclusion_loss.1} parent=15 // pred_check
          %p184 = pneg %p70
        $region56: #{exclusion_loss.1} parent=15 // pred_check_branch
          %186 = sbr.rel (%p184) target = $region58
        $region57: #{exclusion_loss.1} parent=15 // pred_region
          %s187 = sand.u32 %s60, 1
          %s188 = sand.u32 %s60, 1
          %s189 = smul.addr %s188, 24
          %s190 = scalar_lea.vmem [#allocation3], %s189
          %s191 = smul.addr %s15, 9
          %s192 = sadd.s32 %s16, %s191
          %s193 = smul.addr %s192, 8
          %s194 = scalar_lea.vmem %s1, %s193
          // Predicated region
          $region59: #{exclusion_loss.1} parent=57 // pred_check
            _
          $region60: #{exclusion_loss.1} parent=57 // pred_check_branch
            %196 = sbr.rel (0) target = $region62
          $region61: #{exclusion_loss.1} parent=57 // pred_region
            // Predicated region
            $region63: #{exclusion_loss.1} parent=61 // pred_check
              _
            $region64: #{exclusion_loss.1} parent=61 // pred_check_branch
              %198 = sbr.rel (0) target = $region66
            $region65: #{exclusion_loss.1} parent=61 // pred_region
              // Predicated region
              $region78: #{exclusion_loss.1} parent=65 // pred_check
                _
              $region79: #{exclusion_loss.1} parent=65 // pred_check_branch
                %217 = sbr.rel (0) target = $region81
              $region80: #{exclusion_loss.1} parent=65 // pred_region
                loop: start=0, step=1, limit=1
                $region82: #{exclusion_loss.1} parent=80 // loop_pre_header
                  _
                $region83: #{exclusion_loss.1} parent=80 // loop_header
                  %s219 = sphi 0, %s223
                  %p220 = scmp.ge.s32.totalorder %s219, 1
                  %s224 = sphi %s194, %s194
                  %s225 = sphi %s190, %s190
                $region84: #{exclusion_loss.1} parent=80 // loop_header_branch
                  %222 = sbr.rel (%p220) target = $region88
                $region85: #{exclusion_loss.1} parent=80 // loop_body
                  %v226 = vld [vmem:[%s224] sm:$0xff]
                  %227 = vst [vmem:[%s225] sm:$0xff] %v226
                  %v228 = vld [vmem:[%s224 + $0x18] sm:$0xff]
                  %229 = vst [vmem:[%s225 + $0x8] sm:$0xff] %v228
                  %v230 = vld [vmem:[%s224 + $0x30] sm:$0xff]
                  %231 = vst [vmem:[%s225 + $0x10] sm:$0xff] %v230
                $region86: #{exclusion_loss.1} parent=80 // loop_footer
                  %s223 = sadd.s32 1, %s219
                $region87: #{exclusion_loss.1} parent=80 // loop_footer_branch
                  %218 = sbr.rel target = $region83
                $region88: #{exclusion_loss.1} parent=80 // loop_exit
                  _
              $region81: #{exclusion_loss.1} parent=65 // pred_fallthru
                _
              // Predicated region
              $region89: #{exclusion_loss.1} parent=65 // pred_check
                _
              $region90: #{exclusion_loss.1} parent=65 // pred_check_branch
                %233 = sbr.rel target = $region92
              $region91: #{exclusion_loss.1} parent=65 // pred_region
                _
              $region92: #{exclusion_loss.1} parent=65 // pred_fallthru
                _
            $region66: #{exclusion_loss.1} parent=61 // pred_fallthru
              _
            // Predicated region
            $region67: #{exclusion_loss.1} parent=61 // pred_check
              _
            $region68: #{exclusion_loss.1} parent=61 // pred_check_branch
              %200 = sbr.rel target = $region70
            $region69: #{exclusion_loss.1} parent=61 // pred_region
              loop: start=0, step=1, limit=1
              $region71: #{exclusion_loss.1} parent=69 // loop_pre_header
                _
              $region72: #{exclusion_loss.1} parent=69 // loop_header
                %s203 = sphi 0, %s207
                %p204 = scmp.ge.s32.totalorder %s203, 1
                %s208 = sphi %s194, %s194
                %s209 = sphi %s190, %s190
              $region73: #{exclusion_loss.1} parent=69 // loop_header_branch
                %206 = sbr.rel (%p204) target = $region77
              $region74: #{exclusion_loss.1} parent=69 // loop_body
                %v210 = vld [vmem:[%s208] sm:$0xff]
                %211 = vst [vmem:[%s209] sm:$0xff] %v210
                %v212 = vld [vmem:[%s208 + $0x18] sm:$0xff]
                %213 = vst [vmem:[%s209 + $0x8] sm:$0xff] %v212
                %v214 = vld [vmem:[%s208 + $0x30] sm:$0xff]
                %215 = vst [vmem:[%s209 + $0x10] sm:$0xff] %v214
              $region75: #{exclusion_loss.1} parent=69 // loop_footer
                %s207 = sadd.s32 1, %s203
              $region76: #{exclusion_loss.1} parent=69 // loop_footer_branch
                %202 = sbr.rel target = $region72
              $region77: #{exclusion_loss.1} parent=69 // loop_exit
                _
            $region70: #{exclusion_loss.1} parent=61 // pred_fallthru
              _
          $region62: #{exclusion_loss.1} parent=57 // pred_fallthru
            _
          %234 = vnop
        $region58: #{exclusion_loss.1} parent=15 // pred_fallthru
          _
      $region16: #{exclusion_loss.1} parent=5 // pred_fallthru
        _
      %p235 = scmp.le.s32.totalorder 1, %s8
      %p236 = scmp.lt.s32.totalorder %s8, 7
      %p237 = pnand %p235, %p236
      %p238 = pneg %p237
      // Predicated region
      $region93: #{exclusion_loss.1} parent=5 // pred_check
        _
      $region94: #{exclusion_loss.1} parent=5 // pred_check_branch
        %240 = sbr.rel (%p237) target = $region96
      $region95: #{exclusion_loss.1} parent=5 // pred_region
        %s241 = ssub.s32 %s8, 1
        %s242 = sand.u32 %s35, 1
        %s243 = sand.u32 %s35, 1
        %s244 = smul.addr %s243, 24
        %s245 = scalar_lea.vmem [#allocation2], %s244
        // Predicated region
        $region97: #{exclusion_loss.1} parent=95 // pred_check
          %p246 = pneg %p48
        $region98: #{exclusion_loss.1} parent=95 // pred_check_branch
          %248 = sbr.rel (%p246) target = $region100
        $region99: #{exclusion_loss.1} parent=95 // pred_region
          _
        $region100: #{exclusion_loss.1} parent=95 // pred_fallthru
          _
        %s249 = sand.u32 %s63, 1
        %s250 = sand.u32 %s63, 1
        %s251 = smul.addr %s250, 24
        %s252 = scalar_lea.vmem [#allocation3], %s251
        // Predicated region
        $region101: #{exclusion_loss.1} parent=95 // pred_check
          %p253 = pneg %p76
        $region102: #{exclusion_loss.1} parent=95 // pred_check_branch
          %255 = sbr.rel (%p253) target = $region104
        $region103: #{exclusion_loss.1} parent=95 // pred_region
          _
        $region104: #{exclusion_loss.1} parent=95 // pred_fallthru
          _
        %s256 = sand.u32 %s35, 1
        %s257 = sand.u32 %s35, 1
        %s258 = smul.addr %s257, 24
        %s259 = scalar_lea.vmem [#allocation2], %s258
        %p260 = pneg %p48
        %p261 = pneg %p45
        %s262 = sand.u32 %s63, 1
        %s263 = sand.u32 %s63, 1
        %s264 = smul.addr %s263, 24
        %s265 = scalar_lea.vmem [#allocation3], %s264
        %p266 = pneg %p76
        %p267 = pneg %p73
        %p268 = pneg %p114
        %p269 = pneg %p111
        %p270 = scmp.ge.s32.totalorder %s18, 1
        %s271 = scalar_select %p270, 1, 0
        %p272 = scmp.ge.s32.totalorder %s18, 2
        %s273 = scalar_select %p272, 1, 0
        %s274 = sadd.s32 %s271, %s273
        %s275 = smul.u32 9, %s274
        %p276 = scmp.lt.s32.totalorder %s17, 1
        %s277 = scalar_select %p276, %s17, 1
        %p278 = scmp.lt.s32.totalorder %s275, 26
        %s279 = scalar_select %p278, %s275, 26
        %s280 = smul.addr %s277, 27
        %s281 = sadd.s32 %s279, %s280
        %s282 = smul.addr %s281, 8
        %s283 = scalar_lea.vmem %s2, %s282
        %p284 = scmp.ge.s32.totalorder %s18, 1
        %s285 = scalar_select %p284, 1, 0
        %p286 = scmp.ge.s32.totalorder %s18, 2
        %s287 = scalar_select %p286, 1, 0
        %s288 = sadd.s32 %s285, %s287
        %s289 = smul.u32 9, %s288
        %p290 = scmp.lt.s32.totalorder %s17, 1
        %s291 = scalar_select %p290, %s17, 1
        %p292 = scmp.lt.s32.totalorder %s289, 26
        %s293 = scalar_select %p292, %s289, 26
        %s294 = smul.addr %s291, 27
        %s295 = sadd.s32 %s293, %s294
        %s296 = smul.addr %s295, 8
        %s297 = scalar_lea.vmem %s2, %s296
        %p298 = scmp.ge.s32.totalorder %s18, 1
        %s299 = scalar_select %p298, 1, 0
        %p300 = scmp.ge.s32.totalorder %s18, 2
        %s301 = scalar_select %p300, 1, 0
        %s302 = sadd.s32 %s299, %s301
        %s303 = smul.u32 9, %s302
        %p304 = scmp.eq.s32.totalorder %s18, 0
        %p305 = scmp.eq.s32.totalorder %s18, 1
        %p306 = por %p304, %p305
        %p307 = scmp.eq.s32.totalorder %s18, 2
        %p308 = por %p306, %p307
        // Predicated region
        $region105: #{exclusion_loss.1} parent=95 // pred_check
          %p309 = pneg %p308
        $region106: #{exclusion_loss.1} parent=95 // pred_check_branch
          %311 = sbr.rel (%p309) target = $region108
        $region107: #{exclusion_loss.1} parent=95 // pred_region
          %312 = vst [vmem:[%s297] sm:$0xff] 0.0
          %313 = vst [vmem:[%s297 + $0x8] sm:$0xff] 0.0
          %314 = vst [vmem:[%s297 + $0x10] sm:$0xff] 0.0
          %315 = vst [vmem:[%s297 + $0x18] sm:$0xff] 0.0
          %316 = vst [vmem:[%s297 + $0x20] sm:$0xff] 0.0
          %317 = vst [vmem:[%s297 + $0x28] sm:$0xff] 0.0
          %318 = vst [vmem:[%s297 + $0x30] sm:$0xff] 0.0
          %319 = vst [vmem:[%s297 + $0x38] sm:$0xff] 0.0
          %320 = vst [vmem:[%s297 + $0x40] sm:$0xff] 0.0
        $region108: #{exclusion_loss.1} parent=95 // pred_fallthru
          _
        %v321 = vld [vmem:[%s245] sm:$0xff]
        %v322 = vld [vmem:[%s245 + $0x8] sm:$0xff]
        %v323 = vld [vmem:[%s245 + $0x10] sm:$0xff]
        %v324 = vmul.f32 %v321, 0.5
        %v325 = vmul.f32 %v322, 0.5
        %v326 = vmul.f32 %v323, 0.5
        %v327 = vtanh.pop %v324
        %v328 = vtanh.pop %v325
        %v329 = vtanh.pop %v326
        %v330 = vmul.f32 %v327, %v327
        %v331 = vmul.f32 %v328, %v328
        %v332 = vmul.f32 %v329, %v329
        %v333 = vld [vmem:[%s252] sm:$0xff]
        %v334 = vld [vmem:[%s252 + $0x8] sm:$0xff]
        %v335 = vld [vmem:[%s252 + $0x10] sm:$0xff]
        %v336 = vmul.f32 %v333, 0.5
        %v337 = vmul.f32 %v334, 0.5
        %v338 = vmul.f32 %v335, 0.5
        %v339 = vtanh.pop %v336
        %v340 = vtanh.pop %v337
        %v341 = vtanh.pop %v338
        %v342 = vmul.f32 %v339, %v339
        %v343 = vmul.f32 %v340, %v340
        %v344 = vmul.f32 %v341, %v341
        %v345 = vmul.f32 %v330, %v342
        %v346 = vld [vmem:[%s297] sm:$0xff]
        %v347 = vadd.f32 %v346, %v345
        %348 = vst [vmem:[%s297] sm:$0xff] %v347
        %v349 = vmul.f32 %v331, %v342
        %s350 = scalar_lea.vmem %s297, 8
        %v351 = vld [vmem:[%s350] sm:$0xff]
        %v352 = vadd.f32 %v351, %v349
        %353 = vst [vmem:[%s350] sm:$0xff] %v352
        %v354 = vmul.f32 %v332, %v342
        %s355 = scalar_lea.vmem %s297, 16
        %v356 = vld [vmem:[%s355] sm:$0xff]
        %v357 = vadd.f32 %v356, %v354
        %358 = vst [vmem:[%s355] sm:$0xff] %v357
        %v359 = vmul.f32 %v330, %v343
        %s360 = scalar_lea.vmem %s297, 24
        %v361 = vld [vmem:[%s360] sm:$0xff]
        %v362 = vadd.f32 %v361, %v359
        %363 = vst [vmem:[%s360] sm:$0xff] %v362
        %v364 = vmul.f32 %v331, %v343
        %s365 = scalar_lea.vmem %s297, 32
        %v366 = vld [vmem:[%s365] sm:$0xff]
        %v367 = vadd.f32 %v366, %v364
        %368 = vst [vmem:[%s365] sm:$0xff] %v367
        %v369 = vmul.f32 %v332, %v343
        %s370 = scalar_lea.vmem %s297, 40
        %v371 = vld [vmem:[%s370] sm:$0xff]
        %v372 = vadd.f32 %v371, %v369
        %373 = vst [vmem:[%s370] sm:$0xff] %v372
        %v374 = vmul.f32 %v330, %v344
        %s375 = scalar_lea.vmem %s297, 48
        %v376 = vld [vmem:[%s375] sm:$0xff]
        %v377 = vadd.f32 %v376, %v374
        %378 = vst [vmem:[%s375] sm:$0xff] %v377
        %v379 = vmul.f32 %v331, %v344
        %s380 = scalar_lea.vmem %s297, 56
        %v381 = vld [vmem:[%s380] sm:$0xff]
        %v382 = vadd.f32 %v381, %v379
        %383 = vst [vmem:[%s380] sm:$0xff] %v382
        %v384 = vmul.f32 %v332, %v344
        %s385 = scalar_lea.vmem %s297, 64
        %v386 = vld [vmem:[%s385] sm:$0xff]
        %v387 = vadd.f32 %v386, %v384
        %388 = vst [vmem:[%s385] sm:$0xff] %v387
        %p389 = scmp.ge.s32.totalorder %s18, 1
        %s390 = scalar_select %p389, 1, 0
        %p391 = scmp.ge.s32.totalorder %s18, 2
        %s392 = scalar_select %p391, 1, 0
        %s393 = sadd.s32 %s390, %s392
        %s394 = smul.u32 9, %s393
        %p395 = scmp.lt.s32.totalorder %s17, 1
        %s396 = scalar_select %p395, %s17, 1
        %p397 = scmp.lt.s32.totalorder %s394, 26
        %s398 = scalar_select %p397, %s394, 26
        %s399 = smul.addr %s396, 27
        %s400 = sadd.s32 %s398, %s399
        %s401 = smul.addr %s400, 8
        %s402 = scalar_lea.vmem %s2, %s401
        // Predicated region
        $region109: #{exclusion_loss.1} parent=95 // pred_check
          %p403 = pneg %p111
        $region110: #{exclusion_loss.1} parent=95 // pred_check_branch
          %405 = sbr.rel (%p403) target = $region112
        $region111: #{exclusion_loss.1} parent=95 // pred_region
          %p406 = scmp.ge.s32.totalorder %s18, 1
          %s407 = scalar_select %p406, 1, 0
          %p408 = scmp.ge.s32.totalorder %s18, 2
          %s409 = scalar_select %p408, 1, 0
          %s410 = sadd.s32 %s407, %s409
          %s411 = smul.u32 9, %s410
        $region112: #{exclusion_loss.1} parent=95 // pred_fallthru
          _
      $region96: #{exclusion_loss.1} parent=5 // pred_fallthru
        _
      %p412 = scmp.le.s32.totalorder 2, %s8
      // Predicated region
      $region113: #{exclusion_loss.1} parent=5 // pred_check
        %p413 = pneg %p412
      $region114: #{exclusion_loss.1} parent=5 // pred_check_branch
        %415 = sbr.rel (%p413) target = $region116
      $region115: #{exclusion_loss.1} parent=5 // pred_region
        %s416 = ssub.s32 %s8, 2
        // Predicated region
        $region117: #{exclusion_loss.1} parent=115 // pred_check
          %p417 = pneg %p117
        $region118: #{exclusion_loss.1} parent=115 // pred_check_branch
          %419 = sbr.rel (%p417) target = $region120
        $region119: #{exclusion_loss.1} parent=115 // pred_region
          %p420 = scmp.ge.s32.totalorder %s20, 1
          %s421 = scalar_select %p420, 1, 0
          %p422 = scmp.ge.s32.totalorder %s20, 2
          %s423 = scalar_select %p422, 1, 0
          %s424 = sadd.s32 %s421, %s423
          %s425 = smul.u32 9, %s424
          %p426 = scmp.lt.s32.totalorder %s19, 1
          %s427 = scalar_select %p426, %s19, 1
          %p428 = scmp.lt.s32.totalorder %s425, 26
          %s429 = scalar_select %p428, %s425, 26
          %s430 = smul.addr %s427, 27
          %s431 = sadd.s32 %s429, %s430
          %s432 = smul.addr %s431, 8
          %s433 = scalar_lea.vmem %s2, %s432
        $region120: #{exclusion_loss.1} parent=115 // pred_fallthru
          _
      $region116: #{exclusion_loss.1} parent=5 // pred_fallthru
        _
    $region6: #{exclusion_loss.1} parent=1 // loop_footer
      %s12 = sadd.s32 1, %s8
    $region7: #{exclusion_loss.1} parent=1 // loop_footer_branch
      %7 = sbr.rel target = $region3
    $region8: #{exclusion_loss.1} parent=1 // loop_exit
      _

</llo_original>
